<compile_context>
chip_gen: v7x
topology: tpu7x:2x2x1
jax: 0.10.0
libtpu: 0.0.40
codegen_flags: <defaults>
</compile_context>

<pallas_src>
import math

import jax
import jax.numpy as jnp
from jax import lax
from jax.experimental import pallas as pl
from jax.experimental.pallas import tpu as pltpu


def _make_label_smoothing_kernel(size, padding_idx, smoothing):
    confidence = float(1.0 - smoothing)
    smooth_val = float(smoothing) / (size - 2)
    # x*log(x) with the 0*log(0) := 0 convention, computed host-side once.
    c_xlogc = confidence * math.log(confidence) if confidence > 0.0 else 0.0
    s_xlogs = smooth_val * math.log(smooth_val) if smooth_val > 0.0 else 0.0

    def kernel(x_ref, tgt_ref, loss_ref, td_ref):
        x = x_ref[...]                                   # (TN, VP) f32 log-probs
        tgt = tgt_ref[...]                               # (TN, 1)  int32
        tn, vp = x.shape

        cols = lax.broadcasted_iota(jnp.int32, (tn, vp), 1)
        is_tgt = cols == tgt                             # scatter replacement
        valid = (cols < size) & (cols != padding_idx) & (tgt != padding_idx)

        # true_dist (matches scatter_ + column zero + row index_fill_ semantics)
        td = jnp.where(valid, jnp.where(is_tgt, confidence, smooth_val), 0.0)
        td_ref[...] = td.astype(td_ref.dtype)

        # KL(sum) contribution: td*log(td) - td*x, 0 where td == 0.
        xlogx = jnp.where(valid, jnp.where(is_tgt, c_xlogc, s_xlogs), 0.0)
        contrib = xlogx - td * x

        @pl.when(pl.program_id(0) == 0)
        def _init():
            loss_ref[...] = jnp.zeros_like(loss_ref)

        loss_ref[...] += jnp.sum(contrib)

    return kernel


def _choose_tile_rows(n, vp, vmem_budget_bytes=4 << 20):
    """Pick a row tile: as many (8-aligned) rows as fit the VMEM budget, capped."""
    # Per row of tile: x block + true_dist block, each double-buffered (f32).
    bytes_per_row = 2 * 2 * vp * 4
    t = (vmem_budget_bytes // max(bytes_per_row, 1)) // 8 * 8
    t = max(8, min(t, 512))
    n_rounded = ((n + 7) // 8) * 8
    return min(t, max(8, n_rounded))


def label_smoothing(x, target, *, size, padding_idx, smoothing, tile_rows=None):
    """Returns (loss, true_dist) matching the PyTorch LabelSmoothing module."""
    n, v = x.shape
    assert v == size, "x.size(1) must equal size"

    vp = ((v + 127) // 128) * 128                 # lane-dense last dim
    if tile_rows is None:
        tile_rows = _choose_tile_rows(n, vp)
    assert tile_rows % 8 == 0
    np_ = ((n + tile_rows - 1) // tile_rows) * tile_rows

    x_p = jnp.pad(x.astype(jnp.float32), ((0, np_ - n), (0, vp - v)))
    # Padded rows get target = padding_idx so they contribute nothing.
    tgt_p = jnp.pad(target.astype(jnp.int32), (0, np_ - n),
                    constant_values=padding_idx).reshape(np_, 1)

    grid = (np_ // tile_rows,)
    kernel = _make_label_smoothing_kernel(size, padding_idx, smoothing)

    loss, td = pl.pallas_call(
        kernel,
        out_shape=(jax.ShapeDtypeStruct((1, 1), jnp.float32),
                   jax.ShapeDtypeStruct((np_, vp), jnp.float32)),
        grid=grid,
        in_specs=[
            pl.BlockSpec((tile_rows, vp), lambda i: (i, 0)),   # x rows
            pl.BlockSpec((tile_rows, 1), lambda i: (i, 0)),    # targets (column vec)
        ],
        out_specs=(
            pl.BlockSpec((1, 1), lambda i: (0, 0)),            # resident loss accumulator
            pl.BlockSpec((tile_rows, vp), lambda i: (i, 0)),   # true_dist rows
        ),
        compiler_params=pltpu.CompilerParams(
            dimension_semantics=("arbitrary",),                # loss accumulates over grid
            vmem_limit_bytes=64 << 20),
    )(x_p, tgt_p)

    return loss[0, 0], td[:n, :v]


def reference(x, target, *, size, padding_idx, smoothing):
    """Pure-JAX mirror of the PyTorch module forward."""
    confidence = 1.0 - smoothing
    n = x.shape[0]
    true_dist = jnp.full_like(x, smoothing / (size - 2))
    true_dist = true_dist.at[jnp.arange(n), target].set(confidence)
    true_dist = true_dist.at[:, padding_idx].set(0.0)
    true_dist = jnp.where((target == padding_idx)[:, None], 0.0, true_dist)
    safe_log = jnp.log(jnp.where(true_dist > 0, true_dist, 1.0))
    loss = jnp.sum(jnp.where(true_dist > 0, true_dist * (safe_log - x), 0.0))
    return loss, true_dist


if __name__ == "__main__":
    N, V = 14, 100            # tokens x vocab (small, non-aligned to exercise padding/masking)
    PADDING_IDX = 0
    SMOOTHING = 0.1

    key = jax.random.PRNGKey(0)
    kx, kt = jax.random.split(key)
    logits = jax.random.normal(kx, (N, V), dtype=jnp.float32)
    x = jax.nn.log_softmax(logits, axis=-1)                     # log-probabilities
    target = jax.random.randint(kt, (N,), 1, V, dtype=jnp.int32)
    target = target.at[3].set(PADDING_IDX).at[7].set(PADDING_IDX)  # some padded tokens

    loss, true_dist = label_smoothing(
        x, target, size=V, padding_idx=PADDING_IDX, smoothing=SMOOTHING)
    loss = jax.block_until_ready(loss)

    ref_loss, ref_td = reference(
        x, target, size=V, padding_idx=PADDING_IDX, smoothing=SMOOTHING)

    assert true_dist.shape == (N, V)
    assert jnp.allclose(true_dist, ref_td, atol=1e-6, rtol=1e-6), "true_dist mismatch"
    assert jnp.allclose(loss, ref_loss, atol=1e-3, rtol=1e-5), "loss mismatch"

    print("KERNEL_OK")
</pallas_src>

<mosaic_0001>
module attributes {stable_mosaic.version = 11 : i64} {
  func.func @kernel(%arg0: i32, %arg1: memref<16x128xf32, #tpu.memory_space<vmem>>, %arg2: memref<16x1xi32, #tpu.memory_space<vmem>>, %arg3: memref<1x1xf32, #tpu.memory_space<vmem>>, %arg4: memref<16x128xf32, #tpu.memory_space<vmem>>) attributes {dimension_semantics = [#tpu.dimension_semantics<arbitrary>], iteration_bounds = array<i64: 1>, scalar_prefetch = 0 : i64, scratch_operands = 0 : i64, tpu.core_type = #tpu.core_type<tc>, window_params = [{transform_indices = @transform_0, window_bounds = array<i64: 16, 128>}, {transform_indices = @transform_1, window_bounds = array<i64: 16, 1>}, {pipeline_mode = #tpu.pipeline_mode<synchronous>, transform_indices = @transform_2, window_bounds = array<i64: 1, 1>}, {transform_indices = @transform_3, window_bounds = array<i64: 16, 128>}]} {
    %c0 = arith.constant 0 : index
    %c0_0 = arith.constant 0 : index
    %0 = vector.load %arg1[%c0, %c0_0] : memref<16x128xf32, #tpu.memory_space<vmem>>, vector<16x128xf32>
    %c0_1 = arith.constant 0 : index
    %c0_2 = arith.constant 0 : index
    %1 = vector.load %arg2[%c0_1, %c0_2] : memref<16x1xi32, #tpu.memory_space<vmem>>, vector<16x1xi32>
    %2 = tpu.iota {dimensions = array<i32: 1>} : vector<16x128xi32>
    %3 = vector.broadcast %1 : vector<16x1xi32> to vector<16x128xi32>
    %4 = arith.cmpi eq, %2, %3 : vector<16x128xi32>
    %c100_i32 = arith.constant 100 : i32
    %5 = vector.broadcast %c100_i32 : i32 to vector<16x128xi32>
    %6 = arith.cmpi slt, %2, %5 : vector<16x128xi32>
    %c0_i32 = arith.constant 0 : i32
    %7 = vector.broadcast %c0_i32 : i32 to vector<16x128xi32>
    %8 = arith.cmpi ne, %2, %7 : vector<16x128xi32>
    %9 = arith.andi %6, %8 : vector<16x128xi1>
    %c0_i32_3 = arith.constant 0 : i32
    %10 = vector.broadcast %c0_i32_3 : i32 to vector<16x1xi32>
    %11 = arith.cmpi ne, %1, %10 : vector<16x1xi32>
    %12 = vector.broadcast %11 : vector<16x1xi1> to vector<16x128xi1>
    %13 = arith.andi %9, %12 : vector<16x128xi1>
    %cst = arith.constant 0.899999976 : f32
    %cst_4 = arith.constant 0.00102040812 : f32
    %14 = vector.broadcast %cst : f32 to vector<16x128xf32>
    %15 = vector.broadcast %cst_4 : f32 to vector<16x128xf32>
    %16 = arith.select %4, %14, %15 : vector<16x128xi1>, vector<16x128xf32>
    %cst_5 = arith.constant 0.000000e+00 : f32
    %17 = vector.broadcast %cst_5 : f32 to vector<16x128xf32>
    %18 = arith.select %13, %16, %17 : vector<16x128xi1>, vector<16x128xf32>
    %c0_6 = arith.constant 0 : index
    %c0_7 = arith.constant 0 : index
    %19 = vector.load %arg4[%c0_6, %c0_7] : memref<16x128xf32, #tpu.memory_space<vmem>>, vector<16x128xf32>
    tpu.vector_store %arg4[%c0_6, %c0_7], %18 {strides = array<i32>} : memref<16x128xf32, #tpu.memory_space<vmem>>, vector<16x128xf32>,
    %cst_8 = arith.constant -0.0948244631 : f32
    %cst_9 = arith.constant -0.00702811498 : f32
    %20 = vector.broadcast %cst_8 : f32 to vector<16x128xf32>
    %21 = vector.broadcast %cst_9 : f32 to vector<16x128xf32>
    %22 = arith.select %4, %20, %21 : vector<16x128xi1>, vector<16x128xf32>
    %cst_10 = arith.constant 0.000000e+00 : f32
    %23 = vector.broadcast %cst_10 : f32 to vector<16x128xf32>
    %24 = arith.select %13, %22, %23 : vector<16x128xi1>, vector<16x128xf32>
    %25 = arith.mulf %18, %0 : vector<16x128xf32>
    %26 = arith.subf %24, %25 : vector<16x128xf32>
    %c0_i32_11 = arith.constant 0 : i32
    %27 = arith.cmpi eq, %arg0, %c0_i32_11 : i32
    %28 = arith.extui %27 : i1 to i32
    %c0_i32_12 = arith.constant 0 : i32
    %29 = arith.cmpi ne, %28, %c0_i32_12 : i32
    scf.if %29 {
      %cst_18 = arith.constant 0.000000e+00 : f32
      %38 = vector.broadcast %cst_18 : f32 to vector<1x1xf32>
      %c0_19 = arith.constant 0 : index
      %c0_20 = arith.constant 0 : index
      %39 = vector.load %arg3[%c0_19, %c0_20] : memref<1x1xf32, #tpu.memory_space<vmem>>, vector<1x1xf32>
      tpu.vector_store %arg3[%c0_19, %c0_20], %38 {strides = array<i32>} : memref<1x1xf32, #tpu.memory_space<vmem>>, vector<1x1xf32>,
    } else {
    }
    %c0_13 = arith.constant 0 : index
    %c0_14 = arith.constant 0 : index
    %30 = vector.load %arg3[%c0_13, %c0_14] : memref<1x1xf32, #tpu.memory_space<vmem>>, vector<1x1xf32>
    %31 = vector.shape_cast %26 : vector<16x128xf32> to vector<1x16x128xf32>
    %cst_15 = arith.constant dense<0.000000e+00> : vector<1xf32>
    %32 = vector.multi_reduction <add>, %31, %cst_15 [1, 2] : vector<1x16x128xf32> to vector<1xf32>
    %33 = vector.shape_cast %32 : vector<1xf32> to vector<1x1x1xf32>
    %34 = vector.extract %33[0, 0, 0] : f32 from vector<1x1x1xf32>
    %35 = vector.broadcast %34 : f32 to vector<1x1xf32>
    %36 = arith.addf %30, %35 : vector<1x1xf32>
    %c0_16 = arith.constant 0 : index
    %c0_17 = arith.constant 0 : index
    %37 = vector.load %arg3[%c0_16, %c0_17] : memref<1x1xf32, #tpu.memory_space<vmem>>, vector<1x1xf32>
    tpu.vector_store %arg3[%c0_16, %c0_17], %36 {strides = array<i32>} : memref<1x1xf32, #tpu.memory_space<vmem>>, vector<1x1xf32>,
    return
  }
  func.func @transform_0(%arg0: i32) -> (i32, i32) {
    %c0_i32 = arith.constant 0 : i32
    %c0_i32_0 = arith.constant 0 : i32
    return %arg0, %c0_i32 : i32, i32
  }
  func.func @transform_1(%arg0: i32) -> (i32, i32) {
    %c0_i32 = arith.constant 0 : i32
    %c0_i32_0 = arith.constant 0 : i32
    return %arg0, %c0_i32 : i32, i32
  }
  func.func @transform_2(%arg0: i32) -> (i32, i32) {
    %c0_i32 = arith.constant 0 : i32
    %c0_i32_0 = arith.constant 0 : i32
    %c0_i32_1 = arith.constant 0 : i32
    return %c0_i32, %c0_i32_0 : i32, i32
  }
  func.func @transform_3(%arg0: i32) -> (i32, i32) {
    %c0_i32 = arith.constant 0 : i32
    %c0_i32_0 = arith.constant 0 : i32
    return %arg0, %c0_i32 : i32, i32
  }
}

</mosaic_0001>

<llo_original>
// kernel: tpu_custom_call.1
$region0: #{tpu_custom_call.1}
  #allocation0 [shape = 'u32[]', space=smem, size = 0x4, offset = 0x4, fixed_abs, tag = 'smem constant byte address 0x4 - core index']
  #allocation1 [shape = 'u32[144,128]{1,0:T(1,128)}', space=vmem, size = 0x12000, scoped, tag = 'internal scratch']
  %s0 = inlined_call_operand.hbm [shape: f32[16,128], index: 0, kind: input, shape index: {}]
  %s1 = inlined_call_operand.hbm [shape: s32[16,1], index: 1, kind: input, shape index: {}]
  %s2 = inlined_call_operand.hbm [shape: f32[1,1], index: 2, kind: output, shape index: {0}]
  %s3 = inlined_call_operand.hbm [shape: f32[16,128], index: 3, kind: output, shape index: {1}]
  %4 = xla_tuple %s2, %s3
  %s5 = sld [smem:[#allocation0]]
  $region38: #{tpu_custom_call.1} parent=0
    _
  %s7 = ssub.s32 1, %s5
  %s8 = scalar_select 0, %s7, %s5
  $region1: #{tpu_custom_call.1} parent=0
    #allocation2 [shape = 'u8[8192]{0}', space=vmem, size = 0x2000, scoped, tag = 'input window, operand 0, single buffered']
    #allocation3 [shape = 's32[1]{0}', space=sflag, size = 0x4, scoped, tag = 'scoped memory for tpu_custom_call.1']
    #allocation4 [shape = 's32[1]{0}', space=sflag, size = 0x4, scoped, tag = 'scoped memory for tpu_custom_call.1']
    #allocation5 [shape = 'u8[8192]{0}', space=vmem, size = 0x2000, scoped, tag = 'input window, operand 1, single buffered']
    #allocation6 [shape = 's32[1]{0}', space=sflag, size = 0x4, scoped, tag = 'scoped memory for tpu_custom_call.1']
    #allocation7 [shape = 'u8[512]{0}', space=vmem, size = 0x400, scoped, tag = 'output window, operand 0, single buffered']
    #allocation8 [shape = 'u8[8192]{0}', space=vmem, size = 0x2000, scoped, tag = 'output window, operand 1, single buffered']
    #allocation9 [shape = 's32[1]{0}', space=sflag, size = 0x4, scoped, tag = 'scoped memory for tpu_custom_call.1']
    %9 = vsyncpa [#allocation3], 0
    %10 = vsyncpa [#allocation6], 0
    %11 = vsyncpa [#allocation4], 0
    %12 = vsyncpa [#allocation9], 0
    // Predicated region
    $region2: #{tpu_custom_call.1} parent=1 // pred_check
      _
    $region3: #{tpu_custom_call.1} parent=1 // pred_check_branch
      %14 = sbr.rel (0) target = $region5
    $region4: #{tpu_custom_call.1} parent=1 // pred_region
      %s16 = ssub.s32 256, 256
      %17 = vsyncadd [#allocation3], %s16
      %s18 = sshll.u32 [#allocation2], 4
      %s19 = int_to_ptr.vmem [resolvable:$true] %s18
      %24 = dma.hbm_to_vmem [thread:$0]  %s0, 256, %s19, [#allocation3], 128, 128, 8
    $region5: #{tpu_custom_call.1} parent=1 // pred_fallthru
      _
    // Predicated region
    $region6: #{tpu_custom_call.1} parent=1 // pred_check
      _
    $region7: #{tpu_custom_call.1} parent=1 // pred_check_branch
      %26 = sbr.rel (0) target = $region9
    $region8: #{tpu_custom_call.1} parent=1 // pred_region
      %s28 = ssub.s32 256, 256
      %29 = vsyncadd [#allocation6], %s28
      %s30 = sshll.u32 [#allocation5], 4
      %s31 = int_to_ptr.vmem [resolvable:$true] %s30
      %36 = dma.hbm_to_vmem [thread:$0]  %s1, 256, %s31, [#allocation6], 128, 128, 8
    $region9: #{tpu_custom_call.1} parent=1 // pred_fallthru
      _
    // Predicated region
    $region10: #{tpu_custom_call.1} parent=1 // pred_check
      _
    $region11: #{tpu_custom_call.1} parent=1 // pred_check_branch
      %38 = sbr.rel (0) target = $region13
    $region12: #{tpu_custom_call.1} parent=1 // pred_region
      %39 = dma.done [#allocation3], 256
    $region13: #{tpu_custom_call.1} parent=1 // pred_fallthru
      _
    // Predicated region
    $region14: #{tpu_custom_call.1} parent=1 // pred_check
      _
    $region15: #{tpu_custom_call.1} parent=1 // pred_check_branch
      %41 = sbr.rel (0) target = $region17
    $region16: #{tpu_custom_call.1} parent=1 // pred_region
      %42 = dma.done [#allocation6], 256
    $region17: #{tpu_custom_call.1} parent=1 // pred_fallthru
      _
    %v43 = vld [vmem:[#allocation2] sm:$0xff]
    %v44 = vld [vmem:[#allocation2 + $0x8] sm:$0xff]
    %v45 = vld [vmem:[#allocation5] sm:$0xff]
    %v46 = vld [vmem:[#allocation5 + $0x8] sm:$0xff]
    %v47 = vlaneseq
    %v48 = vand.u32 %v47, 127
    %49 = vset.pattern.permute.xlu0 0
    %50 = vperm.xlu0 %49, %v45
    %v51 = vpop.permute.xlu0 %50
    %52 = vset.pattern.permute.xlu0 0
    %53 = vperm.xlu0 %52, %v46
    %v54 = vpop.permute.xlu0 %53
    %vm55 = vcmp.eq.s32.totalorder %v48, %v51
    %vm56 = vcmp.eq.s32.totalorder %v48, %v54
    %vm57 = vcmp.lt.s32.totalorder %v48, 100
    %vm58 = vcmp.ne.s32.totalorder %v48, 0
    %vm59 = vmand %vm57, %vm58
    %vm60 = vcmp.ne.s32.totalorder %v45, 0
    %vm61 = vcmp.ne.s32.totalorder %v46, 0
    %v62 = vsel %vm60, 1, 0
    %v63 = vsel %vm61, 1, 0
    %64 = vset.pattern.permute.xlu0 0
    %65 = vperm.xlu0 %64, %v62
    %v66 = vpop.permute.xlu0 %65
    %67 = vset.pattern.permute.xlu0 0
    %68 = vperm.xlu0 %67, %v63
    %v69 = vpop.permute.xlu0 %68
    %vm70 = vcmp.eq.s32.totalorder %v66, 1
    %vm71 = vcmp.eq.s32.totalorder %v69, 1
    %vm72 = vmand %vm59, %vm70
    %vm73 = vmand %vm59, %vm71
    %v74 = vsel %vm55, 0.9, 0.0010204081
    %v75 = vsel %vm56, 0.9, 0.0010204081
    %v76 = vsel %vm72, %v74, 0.0
    %v77 = vsel %vm73, %v75, 0.0
    %78 = vst [vmem:[#allocation8] sm:$0xff] %v76
    %79 = vst [vmem:[#allocation8 + $0x8] sm:$0xff] %v77
    %v80 = vsel %vm55, -0.09482446, -0.007028115
    %v81 = vsel %vm56, -0.09482446, -0.007028115
    %v82 = vsel %vm72, %v80, 0.0
    %v83 = vsel %vm73, %v81, 0.0
    %v84 = vmul.f32 %v76, %v43
    %v85 = vmul.f32 %v77, %v44
    %v86 = vsub.f32 %v82, %v84
    %v87 = vsub.f32 %v83, %v85
    %p88 = scmp.eq.s32.totalorder 0, 0
    // Predicated region
    $region18: #{tpu_custom_call.1} parent=1 // pred_check
      %p89 = pneg %p88
    $region19: #{tpu_custom_call.1} parent=1 // pred_check_branch
      %91 = sbr.rel (%p89) target = $region21
    $region20: #{tpu_custom_call.1} parent=1 // pred_region
      %vm92 = vcmask 0
      %93 = vst.msk [vmem:[#allocation7] sm:$0x1] %vm92, 0.0
    $region21: #{tpu_custom_call.1} parent=1 // pred_fallthru
      _
    %v94 = vld [vmem:[#allocation7] sm:$0x1]
    %v95 = vadd.f32 %v86, %v87
    %96 = vadd.xlane.f32.xlu0 %v95
    %v97 = vpop.xlane.xlu0 %96
    %v98 = vrot.slane %v97, 4
    %v99 = vadd.f32 %v97, %v98
    %v100 = vrot.slane %v99, 2
    %v101 = vadd.f32 %v99, %v100
    %v102 = vrot.slane %v101, 1
    %v103 = vadd.f32 %v101, %v102
    %s104 = vtos %v103
    %v105 = vstv %s104
    %v106 = vadd.f32 %v94, %v105
    %vm107 = vcmask 0
    %108 = vst.msk [vmem:[#allocation7] sm:$0x1] %vm107, %v106
    // Predicated region
    $region22: #{tpu_custom_call.1} parent=1 // pred_check
      _
    $region23: #{tpu_custom_call.1} parent=1 // pred_check_branch
      %110 = sbr.rel (0) target = $region25
    $region24: #{tpu_custom_call.1} parent=1 // pred_region
      %s112 = ssub.s32 16, 16
      %113 = vsyncadd [#allocation4], %s112
      %s115 = sshll.u32 [#allocation7], 4
      %s116 = int_to_ptr.vmem [resolvable:$true] %s115
      %118 = dma.vmem_to_hbm [thread:$0]  %s116, 16, %s2, [#allocation4]
    $region25: #{tpu_custom_call.1} parent=1 // pred_fallthru
      _
    // Predicated region
    $region26: #{tpu_custom_call.1} parent=1 // pred_check
      _
    $region27: #{tpu_custom_call.1} parent=1 // pred_check_branch
      %120 = sbr.rel (0) target = $region29
    $region28: #{tpu_custom_call.1} parent=1 // pred_region
      %s122 = ssub.s32 256, 256
      %123 = vsyncadd [#allocation9], %s122
      %s124 = sshll.u32 [#allocation8], 4
      %s125 = int_to_ptr.vmem [resolvable:$true] %s124
      %130 = dma.vmem_to_hbm [thread:$0]  %s125, 256, %s3, [#allocation9], 128, 128, 8
    $region29: #{tpu_custom_call.1} parent=1 // pred_fallthru
      _
    // Predicated region
    $region30: #{tpu_custom_call.1} parent=1 // pred_check
      _
    $region31: #{tpu_custom_call.1} parent=1 // pred_check_branch
      %132 = sbr.rel (0) target = $region33
    $region32: #{tpu_custom_call.1} parent=1 // pred_region
      %133 = dma.done [#allocation4], 16
    $region33: #{tpu_custom_call.1} parent=1 // pred_fallthru
      _
    // Predicated region
    $region34: #{tpu_custom_call.1} parent=1 // pred_check
      _
    $region35: #{tpu_custom_call.1} parent=1 // pred_check_branch
      %135 = sbr.rel (0) target = $region37
    $region36: #{tpu_custom_call.1} parent=1 // pred_region
      %136 = dma.done [#allocation9], 256
    $region37: #{tpu_custom_call.1} parent=1 // pred_fallthru
      _
    %137 = vsyncpa [#allocation3], 1
    %138 = vsyncpa [#allocation6], 1
    %139 = vsyncpa [#allocation4], 1
    %140 = vsyncpa [#allocation9], 1

</llo_original>
